<compile_context>
chip_gen: v5e
topology: v5e:2x2
jax: 0.10.0
libtpu: 0.0.40
codegen_flags: <defaults>
</compile_context>

<pallas_src>
import jax
import jax.numpy as jnp
from jax import lax
from jax.experimental import pallas as pl
from jax.experimental.pallas import tpu as pltpu

_SUBLANE = 8


def _round_up(x: int, m: int) -> int:
    return ((x + m - 1) // m) * m


# ---------------------------------------------------------------------------
# Path 1: small vocabulary — table resident in VMEM, one-hot matmul on the MXU.
# ---------------------------------------------------------------------------
def _embedding_small_kernel(ids_ref, w_ref, out_ref):
    # ids_ref: (tm, 1) int32 VMEM block
    # w_ref:   (V, D)  VMEM (same block index every step -> loaded once, resident)
    # out_ref: (tm, D) VMEM output tile
    tm = out_ref.shape[0]
    v = w_ref.shape[0]
    ids = ids_ref[...]                                        # (tm, 1)
    cols = lax.broadcasted_iota(jnp.int32, (tm, v), 1)        # (tm, V)
    one_hot = (ids == cols).astype(w_ref.dtype)               # exact 0/1 values
    out_ref[...] = jnp.dot(
        one_hot, w_ref[...], preferred_element_type=jnp.float32
    ).astype(out_ref.dtype)


def _embedding_small(ids_flat, weight, tm):
    n = ids_flat.shape[0]
    vocab, d_model = weight.shape
    itemsize = jnp.dtype(weight.dtype).itemsize

    if tm is None:
        tm = 128
    tm = max(_SUBLANE, min(_round_up(tm, _SUBLANE), _round_up(n, _SUBLANE)))
    n_pad = _round_up(n, tm)
    if n_pad != n:
        ids_flat = jnp.pad(ids_flat, (0, n_pad - n))          # pad ids -> row 0, sliced away later
    ids2d = ids_flat.reshape(n_pad, 1)
    nsteps = n_pad // tm

    return pl.pallas_call(
        _embedding_small_kernel,
        out_shape=jax.ShapeDtypeStruct((n_pad, d_model), weight.dtype),
        grid=(nsteps,),
        in_specs=[
            pl.BlockSpec((tm, 1), lambda i: (i, 0)),                 # ids tile (VMEM)
            pl.BlockSpec((vocab, d_model), lambda i: (0, 0)),        # whole table, resident
        ],
        out_specs=pl.BlockSpec((tm, d_model), lambda i: (i, 0)),
        compiler_params=pltpu.CompilerParams(
            dimension_semantics=("parallel",),                       # independent token tiles
            vmem_limit_bytes=32 * 1024 * 1024,
        ),
        cost_estimate=pl.CostEstimate(
            flops=2 * n_pad * vocab * d_model,
            transcendentals=0,
            bytes_accessed=(vocab * d_model + 2 * n_pad * d_model) * itemsize + n_pad * 4,
        ),
    )(ids2d, weight)


# ---------------------------------------------------------------------------
# Path 2: large vocabulary — table in HBM, per-row DMA gather with manual
# cross-step double buffering (P4).
# ---------------------------------------------------------------------------
def _embedding_gather_kernel(ids_cur_ref, ids_nxt_ref, w_hbm, out_hbm,
                             buf, row_sems, wb_sems):
    # ids_cur_ref: (tm,) int32 SMEM — ids of this step
    # ids_nxt_ref: (tm,) int32 SMEM — ids of the next step (lookahead)
    # w_hbm:       (V, D) table left in HBM (pl.ANY)
    # out_hbm:     (Npad, D) output left in HBM (pl.ANY), written via DMA
    # buf:         (2, tm, D) VMEM staging buffer (two slots)
    # row_sems:    (2, tm) DMA sems, one per gathered row per slot
    # wb_sems:     (2,)    DMA sems for the dense writeback of each slot
    i = pl.program_id(0)
    nsteps = pl.num_programs(0)
    tm = buf.shape[1]
    slot = i % 2
    nslot = 1 - slot

    def issue_gathers(ids_ref, s):
        def body(j, carry):
            row = ids_ref[j]
            pltpu.make_async_copy(
                w_hbm.at[pl.ds(row, 1), :],
                buf.at[s, pl.ds(j, 1), :],
                row_sems.at[s, j],
            ).start()
            return carry
        lax.fori_loop(0, tm, body, 0, unroll=8)

    def wait_gathers(s):
        def body(j, carry):
            # wait only needs shape-compatible refs + the right semaphore
            pltpu.make_async_copy(
                w_hbm.at[pl.ds(0, 1), :],
                buf.at[s, pl.ds(j, 1), :],
                row_sems.at[s, j],
            ).wait()
            return carry
        lax.fori_loop(0, tm, body, 0, unroll=8)

    def wb_copy(step, s):
        return pltpu.make_async_copy(
            buf.at[s],
            out_hbm.at[pl.ds(step * tm, tm), :],
            wb_sems.at[s],
        )

    # Prime the pipeline: step 0 gathers its own rows.
    @pl.when(i == 0)
    def _():
        issue_gathers(ids_cur_ref, slot)

    # Before reusing the other slot for step i+1's gathers, drain step i-1's
    # writeback (it reads from that slot).
    @pl.when(jnp.logical_and(i >= 1, i + 1 < nsteps))
    def _():
        wb_copy(i - 1, nslot).wait()

    # Lookahead: issue step i+1's row gathers so they overlap with this step's
    # waits and writeback (cross-step double buffering).
    @pl.when(i + 1 < nsteps)
    def _():
        issue_gathers(ids_nxt_ref, nslot)

    # Wait for this step's rows, then push the finished tile to HBM with one
    # dense DMA.
    wait_gathers(slot)
    wb_copy(i, slot).start()

    # Drain all outstanding writebacks at the end of the grid.
    @pl.when(jnp.logical_and(i == nsteps - 1, i >= 1))
    def _():
        wb_copy(i - 1, nslot).wait()

    @pl.when(i == nsteps - 1)
    def _():
        wb_copy(i, slot).wait()


def _embedding_large(ids_flat, weight, tm, gather_buffer_budget_bytes):
    n = ids_flat.shape[0]
    vocab, d_model = weight.shape
    itemsize = jnp.dtype(weight.dtype).itemsize

    if tm is None:
        tm = 256  # big enough to amortize per-step overhead / approach HBM BW
    # Budget the (2, tm, D) staging buffer so it fits VMEM on every generation
    # (v7x: 64 MiB physical; v5e/v6e: 128 MiB).
    tm_cap = max(_SUBLANE,
                 (gather_buffer_budget_bytes // (2 * d_model * itemsize)) // _SUBLANE * _SUBLANE)
    tm = max(_SUBLANE, min(_round_up(tm, _SUBLANE), tm_cap, _round_up(n, _SUBLANE)))

    n_pad = _round_up(n, tm)
    if n_pad != n:
        ids_flat = jnp.pad(ids_flat, (0, n_pad - n))   # padded slots gather row 0, sliced away
    nsteps = n_pad // tm

    vmem_limit = min(100 * 1024 * 1024,
                     max(32 * 1024 * 1024, 2 * tm * d_model * itemsize + 8 * 1024 * 1024))

    # TODO(synk): on v7x, split the token tiles across both TensorCores
    # (CORE_PARALLEL / core_map); the cross-step double buffering below carries
    # state between steps so the single grid axis must stay "arbitrary".
    # TODO(synk): for bf16/fp8 tables, bitcast rows to a u32 view so every row
    # DMA segment stays 32-bit sublane-dense.
    return pl.pallas_call(
        _embedding_gather_kernel,
        out_shape=jax.ShapeDtypeStruct((n_pad, d_model), weight.dtype),
        grid=(nsteps,),
        in_specs=[
            pl.BlockSpec((tm,), lambda i: (i,),
                         memory_space=pltpu.MemorySpace.SMEM),        # ids of step i
            pl.BlockSpec((tm,), lambda i: (jnp.minimum(i + 1, nsteps - 1),),
                         memory_space=pltpu.MemorySpace.SMEM),        # ids of step i+1
            pl.BlockSpec(memory_space=pl.ANY),                        # table stays in HBM
        ],
        out_specs=pl.BlockSpec(memory_space=pl.ANY),                  # output stays in HBM
        scratch_shapes=[
            pltpu.VMEM((2, tm, d_model), weight.dtype),               # gather staging, 2 slots
            pltpu.SemaphoreType.DMA((2, tm)),                         # per-row gather sems
            pltpu.SemaphoreType.DMA((2,)),                            # writeback sems
        ],
        compiler_params=pltpu.CompilerParams(
            dimension_semantics=("arbitrary",),   # sequential: state carries across steps
            vmem_limit_bytes=vmem_limit,
        ),
        cost_estimate=pl.CostEstimate(
            flops=0,
            transcendentals=0,
            bytes_accessed=2 * n_pad * d_model * itemsize + n_pad * 4,
        ),
    )(ids_flat, ids_flat, weight)


# ---------------------------------------------------------------------------
# Public forward
# ---------------------------------------------------------------------------
def embedding_forward(token_ids: jax.Array, weight: jax.Array, *,
                      tm: int | None = None,
                      vmem_table_budget_bytes: int = 4 * 1024 * 1024,
                      gather_buffer_budget_bytes: int = 16 * 1024 * 1024,
                      force_hbm_gather: bool = False) -> jax.Array:
    """token_ids: (batch, seq) int; weight: (V, D) -> (batch, seq, D)."""
    assert token_ids.ndim == 2 and weight.ndim == 2
    batch, seq = token_ids.shape
    vocab, d_model = weight.shape
    n = batch * seq
    itemsize = jnp.dtype(weight.dtype).itemsize

    # PyTorch nn.Embedding raises on out-of-range ids; we clamp instead so an
    # invalid id can never turn into an unchecked OOB DMA (documented divergence).
    ids_flat = jnp.clip(token_ids.reshape(n).astype(jnp.int32), 0, vocab - 1)

    table_bytes = vocab * d_model * itemsize
    if (not force_hbm_gather) and table_bytes <= vmem_table_budget_bytes:
        out_flat = _embedding_small(ids_flat, weight, tm)
    else:
        out_flat = _embedding_large(ids_flat, weight, tm, gather_buffer_budget_bytes)

    return out_flat[:n].reshape(batch, seq, d_model)


if __name__ == "__main__":
    key = jax.random.PRNGKey(0)
    k_w, k_ids = jax.random.split(key)

    num_embeddings = 64     # vocab size
    embedding_dim = 128     # d_model
    batch, seq = 2, 8

    weight = jax.random.normal(k_w, (num_embeddings, embedding_dim), dtype=jnp.float32)
    token_ids = jax.random.randint(k_ids, (batch, seq), 0, num_embeddings, dtype=jnp.int32)
    ref = weight[token_ids]    # == one_hot(token_ids) @ weight

    # Path 1: small-vocab fast path (VMEM-resident table, one-hot matmul).
    out_small = embedding_forward(token_ids, weight)
    jax.block_until_ready(out_small)
    assert out_small.shape == (batch, seq, embedding_dim)
    assert jnp.allclose(out_small, ref, atol=1e-6), "small path mismatch"

    # Path 2: force the large-vocab HBM gather path (per-row DMAs + cross-step
    # double buffering) so it is exercised at small shape too (nsteps = 2).
    out_large = embedding_forward(token_ids, weight, tm=8, force_hbm_gather=True)
    jax.block_until_ready(out_large)
    assert jnp.allclose(out_large, ref, atol=1e-6), "gather path mismatch (nsteps=2)"

    # Longer sequence to cycle both staging slots several times (nsteps = 4).
    token_ids2 = jax.random.randint(jax.random.PRNGKey(1), (2, 16), 0, num_embeddings,
                                    dtype=jnp.int32)
    out_large2 = embedding_forward(token_ids2, weight, tm=8, force_hbm_gather=True)
    jax.block_until_ready(out_large2)
    assert jnp.allclose(out_large2, weight[token_ids2], atol=1e-6), "gather path mismatch (nsteps=4)"

    print("KERNEL_OK")
</pallas_src>

<mosaic_0001>
module attributes {stable_mosaic.version = 11 : i64} {
  func.func @_embedding_small_kernel(%arg0: i32, %arg1: memref<16x1xi32, #tpu.memory_space<vmem>>, %arg2: memref<64x128xf32, #tpu.memory_space<vmem>>, %arg3: memref<16x128xf32, #tpu.memory_space<vmem>>) attributes {dimension_semantics = [#tpu.dimension_semantics<parallel>], iteration_bounds = array<i64: 1>, scalar_prefetch = 0 : i64, scratch_operands = 0 : i64, tpu.core_type = #tpu.core_type<tc>, window_params = [{transform_indices = @transform_0, window_bounds = array<i64: 16, 1>}, {pipeline_mode = #tpu.pipeline_mode<synchronous>, transform_indices = @transform_1, window_bounds = array<i64: 64, 128>}, {transform_indices = @transform_2, window_bounds = array<i64: 16, 128>}]} {
    %c0 = arith.constant 0 : index
    %c0_0 = arith.constant 0 : index
    %0 = vector.load %arg1[%c0, %c0_0] : memref<16x1xi32, #tpu.memory_space<vmem>>, vector<16x1xi32>
    %1 = tpu.iota {dimensions = array<i32: 1>} : vector<16x64xi32>
    %2 = vector.broadcast %0 : vector<16x1xi32> to vector<16x64xi32>
    %3 = arith.cmpi eq, %2, %1 : vector<16x64xi32>
    %4 = arith.extui %3 : vector<16x64xi1> to vector<16x64xi32>
    %5 = arith.sitofp %4 : vector<16x64xi32> to vector<16x64xf32>
    %c0_1 = arith.constant 0 : index
    %c0_2 = arith.constant 0 : index
    %6 = vector.load %arg2[%c0_1, %c0_2] : memref<64x128xf32, #tpu.memory_space<vmem>>, vector<64x128xf32>
    %cst = arith.constant dense<0.000000e+00> : vector<16x128xf32>
    %7 = tpu.matmul %5, %6, %cst {dimension_numbers = #tpu.dot_dimension_numbers<[1], [0], [0], [1], [0, 0, 1, 1], [], []>} : vector<16x64xf32>, vector<64x128xf32>, vector<16x128xf32> -> vector<16x128xf32>
    %c0_3 = arith.constant 0 : index
    %c0_4 = arith.constant 0 : index
    %8 = vector.load %arg3[%c0_3, %c0_4] : memref<16x128xf32, #tpu.memory_space<vmem>>, vector<16x128xf32>
    tpu.vector_store %arg3[%c0_3, %c0_4], %7 {strides = array<i32>} : memref<16x128xf32, #tpu.memory_space<vmem>>, vector<16x128xf32>,
    return
  }
  func.func @transform_0(%arg0: i32) -> (i32, i32) {
    %c0_i32 = arith.constant 0 : i32
    %c0_i32_0 = arith.constant 0 : i32
    return %arg0, %c0_i32 : i32, i32
  }
  func.func @transform_1(%arg0: i32) -> (i32, i32) {
    %c0_i32 = arith.constant 0 : i32
    %c0_i32_0 = arith.constant 0 : i32
    %c0_i32_1 = arith.constant 0 : i32
    return %c0_i32, %c0_i32_0 : i32, i32
  }
  func.func @transform_2(%arg0: i32) -> (i32, i32) {
    %c0_i32 = arith.constant 0 : i32
    %c0_i32_0 = arith.constant 0 : i32
    return %arg0, %c0_i32 : i32, i32
  }
}

</mosaic_0001>

<llo_original>
// kernel: tpu_custom_call.1
$region0: #{tpu_custom_call.1}
  #allocation0 [shape = 'u32[]', space=smem, size = 0x4, offset = 0x4, fixed_abs, tag = 'smem constant byte address 0x4 - core index']
  #allocation1 [shape = 'u32[72,128]{1,0:T(1,128)}', space=vmem, size = 0x9000, scoped, tag = 'internal scratch']
  %s0 = inlined_call_operand.vmem [shape: s32[16,1], index: 0, kind: input, shape index: {}]
  %s1 = inlined_call_operand.hbm [shape: f32[64,128], index: 1, kind: input, shape index: {}]
  %s2 = inlined_call_operand.hbm [shape: f32[16,128], index: 2, kind: output, shape index: {}]
  %s3 = sld [smem:[#allocation0]]
  $region22: #{tpu_custom_call.1} parent=0
    _
  %s5 = ssub.s32 1, %s3
  %s6 = scalar_select 0, %s5, %s3
  $region1: #{tpu_custom_call.1} parent=0
    #allocation2 [shape = 'u8[32768]{0}', space=vmem, size = 0x8000, scoped, tag = 'input window, operand 1, single buffered']
    #allocation3 [shape = 's32[1]{0}', space=sflag, size = 0x4, scoped, tag = 'scoped memory for tpu_custom_call.1']
    #allocation4 [shape = 's32[1]{0}', space=sflag, size = 0x4, scoped, tag = 'scoped memory for tpu_custom_call.1']
    #allocation5 [shape = 'u8[8192]{0}', space=vmem, size = 0x2000, scoped, tag = 'output window, operand 0, single buffered']
    %7 = vsyncpa [#allocation3], 0
    %8 = vsyncpa [#allocation4], 0
    // Predicated region
    $region2: #{tpu_custom_call.1} parent=1 // pred_check
      _
    $region3: #{tpu_custom_call.1} parent=1 // pred_check_branch
      %10 = sbr.rel (0) target = $region5
    $region4: #{tpu_custom_call.1} parent=1 // pred_region
      _
    $region5: #{tpu_custom_call.1} parent=1 // pred_fallthru
      _
    // Predicated region
    $region6: #{tpu_custom_call.1} parent=1 // pred_check
      _
    $region7: #{tpu_custom_call.1} parent=1 // pred_check_branch
      %12 = sbr.rel (0) target = $region9
    $region8: #{tpu_custom_call.1} parent=1 // pred_region
      %14 = vsyncadd [#allocation3], 0
      %s15 = sshll.u32 %s1, 4
      %s16 = int_to_ptr.hbm [resolvable:$true] %s15
      %s17 = sshll.u32 [#allocation2], 4
      %s18 = int_to_ptr.vmem [resolvable:$true] %s17
      %23 = dma.hbm_to_vmem [thread:$0]  %s16, 1024, %s18, [#allocation3], 128, 128, 8
    $region9: #{tpu_custom_call.1} parent=1 // pred_fallthru
      _
    // Predicated region
    $region10: #{tpu_custom_call.1} parent=1 // pred_check
      _
    $region11: #{tpu_custom_call.1} parent=1 // pred_check_branch
      %25 = sbr.rel (0) target = $region13
    $region12: #{tpu_custom_call.1} parent=1 // pred_region
      %27 = dma.done [#allocation3], 1024
    $region13: #{tpu_custom_call.1} parent=1 // pred_fallthru
      _
    %v28 = vld [vmem:[%s0] sm:$0xff]
    %v29 = vld [vmem:[%s0 + $0x8] sm:$0xff]
    %v30 = vlaneseq
    %v31 = vand.u32 %v30, 127
    %32 = vset.pattern.permute.xlu0 0
    %33 = vperm.xlu0 %32, %v28
    %v34 = vpop.permute.xlu0 %33
    %35 = vset.pattern.permute.xlu0 0
    %36 = vperm.xlu0 %35, %v29
    %v37 = vpop.permute.xlu0 %36
    %vm38 = vcmp.eq.s32.totalorder %v34, %v31
    %vm39 = vcmp.eq.s32.totalorder %v37, %v31
    %v40 = vsel %vm38, 1, 0
    %v41 = vsel %vm39, 1, 0
    %v42 = vcvt.s32.f32 %v40
    %v43 = vcvt.s32.f32 %v41
    %v44 = vld [vmem:[#allocation2] sm:$0xff]
    %v45 = vld [vmem:[#allocation2 + $0x8] sm:$0xff]
    %v46 = vld [vmem:[#allocation2 + $0x10] sm:$0xff]
    %v47 = vld [vmem:[#allocation2 + $0x18] sm:$0xff]
    %v48 = vld [vmem:[#allocation2 + $0x20] sm:$0xff]
    %v49 = vld [vmem:[#allocation2 + $0x28] sm:$0xff]
    %v50 = vld [vmem:[#allocation2 + $0x30] sm:$0xff]
    %v51 = vld [vmem:[#allocation2 + $0x38] sm:$0xff]
    %vm52 = vcmask 523264
    %v54 = vsel %vm52, %v42, 0
    %v57 = vsel %vm52, %v43, 0
    %59 = vmatpush.msra.mxu0 0.0
    %60 = vmatpush.msra.mxu0 0.0
    %61 = vmatpush.msra.mxu0 0.0
    %62 = vmatpush.msra.mxu0 0.0
    %63 = vmatpush.msra.mxu0 0.0
    %64 = vmatpush.msra.mxu0 0.0
    %65 = vmatpush.msra.mxu0 0.0
    %66 = vmatpush.msra.mxu0 0.0
    %67 = vmatpush.msra.mxu0 %v51
    %68 = vmatpush.msra.mxu0 %v50
    %69 = vmatpush.msra.mxu0 %v49
    %70 = vmatpush.msra.mxu0 %v48
    %71 = vmatpush.msra.mxu0 %v47
    %72 = vmatpush.msra.mxu0 %v46
    %73 = vmatpush.msra.mxu0 %v45
    %74 = vmatpush.msra.mxu0 %v44
    %75 = vmatmul.f32.gmra.mxu0 %v54
    %v76 = vpop.f32.mrf.mxu0
    %v77 = vadd.f32 0.0, %v76
    %78 = vmatmul.f32.gmra.mxu0 %v57
    %v79 = vpop.f32.mrf.mxu0
    %v80 = vadd.f32 0.0, %v79
    %81 = vdwg.mxu0
    %82 = vst [vmem:[#allocation5] sm:$0xff] %v77
    %83 = vst [vmem:[#allocation5 + $0x8] sm:$0xff] %v80
    // Predicated region
    $region14: #{tpu_custom_call.1} parent=1 // pred_check
      _
    $region15: #{tpu_custom_call.1} parent=1 // pred_check_branch
      %85 = sbr.rel (0) target = $region17
    $region16: #{tpu_custom_call.1} parent=1 // pred_region
      %87 = vsyncadd [#allocation4], 0
      %s88 = sshll.u32 [#allocation5], 4
      %s89 = int_to_ptr.vmem [resolvable:$true] %s88
      %s90 = sshll.u32 %s2, 4
      %s91 = int_to_ptr.hbm [resolvable:$true] %s90
      %96 = dma.vmem_to_hbm [thread:$0]  %s89, 256, %s91, [#allocation4], 128, 128, 8
    $region17: #{tpu_custom_call.1} parent=1 // pred_fallthru
      _
    // Predicated region
    $region18: #{tpu_custom_call.1} parent=1 // pred_check
      _
    $region19: #{tpu_custom_call.1} parent=1 // pred_check_branch
      %98 = sbr.rel (0) target = $region21
    $region20: #{tpu_custom_call.1} parent=1 // pred_region
      %100 = dma.done [#allocation4], 256
    $region21: #{tpu_custom_call.1} parent=1 // pred_fallthru
      _
    %101 = vsyncpa [#allocation3], 1
    %102 = vsyncpa [#allocation4], 1

</llo_original>
